<compile_context>
chip_gen: v5e
topology: v5e:2x2
jax: 0.10.0
libtpu: 0.0.40
codegen_flags: <defaults>
</compile_context>

<pallas_src>
import jax
import jax.numpy as jnp
from jax.experimental import pallas as pl
from jax.experimental.pallas import tpu as pltpu


def _normalize_kernel(scale_ref, bias_ref, x_ref, o_ref):
    # scale_ref / bias_ref: (TR, 1) f32 per-row (= per-channel) affine params
    # x_ref / o_ref       : (TR, HW) tile of the flattened (B*C, H*W) images
    x = x_ref[...].astype(jnp.float32)
    o_ref[...] = (x * scale_ref[...] + bias_ref[...]).astype(o_ref.dtype)


def _vmem_capacity_bytes():
    """Per-core VMEM capacity; fall back to the most restrictive gen (v7x)."""
    try:
        return int(pltpu.get_tpu_info().vmem_capacity_bytes)
    except Exception:
        return 64 * 1024 * 1024


def _sublane(itemsize):
    # Sublane tile height for the second-minor dim: f32 -> 8, bf16 -> 16, i8 -> 32.
    return max(8, 32 // int(itemsize))


def _choose_rows_per_block(rows, hw, itemsize, target_block_bytes):
    """Rows per grid step: a sublane-aligned row count whose *input* tile is
    ~target_block_bytes, or all rows if they already fit in one block."""
    sub = _sublane(itemsize)
    row_bytes = hw * itemsize
    tr = (target_block_bytes // row_bytes) // sub * sub
    tr = max(sub, tr)
    if tr >= rows:
        return rows  # single full-extent block (need not be sublane-aligned)
    return tr


def gamma_wrap_forward(x, gammas, mean, std, *, out_dtype=None, alias_input=False):
    """Pallas equivalent of Gamma_Wrap_for_ResNet.forward's own compute.

    Normalizes x per channel with (mean, std).  The wrapped gamma-modulated
    ResNet (self.model) would then be called on (normalized, gammas); it is
    external to this module, so the normalized tensor is returned and
    `gammas` is left for the caller to forward unchanged.

    out_dtype:    emit e.g. bf16 directly if the downstream model runs in bf16
                  (halves the HBM write bytes for f32 inputs).
    alias_input:  alias the output to x's buffer (use with jit donation when
                  the raw images are no longer needed) to avoid a second
                  B*C*H*W HBM allocation.
    """
    B, C, H, W = x.shape
    assert C == mean.shape[0] == std.shape[0]
    rows = B * C
    HW = H * W
    out_dtype = x.dtype if out_dtype is None else jnp.dtype(out_dtype)

    # (x - mean) / std  ==  x * scale + bias, folded once here.
    scale = (1.0 / std).astype(jnp.float32)
    bias = (-mean / std).astype(jnp.float32)
    # Per-row (= per-channel) params for the (B*C, HW) layout; tiny arrays.
    scale_rows = jnp.tile(scale, B).reshape(rows, 1)
    bias_rows = jnp.tile(bias, B).reshape(rows, 1)

    # Layout plumbing only (no extra HBM traffic): lane-dense last dim H*W,
    # sublane-dense rows.
    x_flat = x.reshape(rows, HW)

    capacity = _vmem_capacity_bytes()
    target_block_bytes = min(8 << 20, capacity // 8)  # ~8 MiB of input per step
    TR = _choose_rows_per_block(rows, HW, x.dtype.itemsize, target_block_bytes)
    grid = pl.cdiv(rows, TR)  # clipped final block; odd batches stay efficient

    # Real double-buffered footprint: (in + out) tiles x 2 buffers, plus the
    # tiny per-row param tiles and some margin.  Keep it within this chip's
    # VMEM (v7x: 64 MiB per TensorCore).
    tile_bytes = TR * HW * (x.dtype.itemsize + out_dtype.itemsize) * 2
    vmem_limit = int(min(capacity, max(32 << 20, tile_bytes + (2 << 20))))

    extra_kwargs = {}
    if alias_input and out_dtype == x.dtype:
        extra_kwargs["input_output_aliases"] = {2: 0}

    out_flat = pl.pallas_call(
        _normalize_kernel,
        out_shape=jax.ShapeDtypeStruct((rows, HW), out_dtype),
        grid=(grid,),
        in_specs=[
            pl.BlockSpec((TR, 1), lambda i: (i, 0)),    # per-row scale
            pl.BlockSpec((TR, 1), lambda i: (i, 0)),    # per-row bias
            pl.BlockSpec((TR, HW), lambda i: (i, 0)),   # x rows
        ],
        out_specs=pl.BlockSpec((TR, HW), lambda i: (i, 0)),
        compiler_params=pltpu.CompilerParams(
            dimension_semantics=("parallel",),
            vmem_limit_bytes=vmem_limit,
        ),
        **extra_kwargs,
    )(scale_rows, bias_rows, x_flat)

    normalized = out_flat.reshape(B, C, H, W)

    # TODO(synk): `self.model.forward(normalized, gammas)` delegates to the
    # externally-supplied gamma-modulated ResNet; it is not defined by this
    # module, so `normalized` is returned and `gammas` passes through to the
    # caller unchanged.
    return normalized


if __name__ == "__main__":
    key = jax.random.PRNGKey(0)
    kx, kg = jax.random.split(key)

    # Small shapes consistent with the module: NCHW with C=3 (ImageNet stats).
    B, C, H, W = 2, 3, 16, 16
    x = jax.random.uniform(kx, (B, C, H, W), dtype=jnp.float32)
    gammas = jax.random.normal(kg, (B, 8), dtype=jnp.float32)  # pass-through

    # Deterministic parameters from __init__ (ImageNet mean/std).
    mean = jnp.array([0.485, 0.456, 0.406], dtype=jnp.float32)
    std = jnp.array([0.229, 0.224, 0.225], dtype=jnp.float32)

    out = gamma_wrap_forward(x, gammas, mean, std)
    out = jax.block_until_ready(out)

    # Reference check (plain JAX, same semantics as the PyTorch broadcast).
    ref = (x - mean.reshape(1, C, 1, 1)) / std.reshape(1, C, 1, 1)
    assert out.shape == x.shape and out.dtype == x.dtype
    assert jnp.allclose(out, ref, atol=1e-5, rtol=1e-5)

    print("KERNEL_OK")
</pallas_src>

<mosaic_0001>
module attributes {stable_mosaic.version = 11 : i64} {
  func.func @_normalize_kernel(%arg0: i32, %arg1: memref<6x1xf32, #tpu.memory_space<vmem>>, %arg2: memref<6x1xf32, #tpu.memory_space<vmem>>, %arg3: memref<6x256xf32, #tpu.memory_space<vmem>>, %arg4: memref<6x256xf32, #tpu.memory_space<vmem>>) attributes {dimension_semantics = [#tpu.dimension_semantics<parallel>], iteration_bounds = array<i64: 1>, scalar_prefetch = 0 : i64, scratch_operands = 0 : i64, tpu.core_type = #tpu.core_type<tc>, window_params = [{transform_indices = @transform_0, window_bounds = array<i64: 6, 1>}, {transform_indices = @transform_1, window_bounds = array<i64: 6, 1>}, {transform_indices = @transform_2, window_bounds = array<i64: 6, 256>}, {transform_indices = @transform_3, window_bounds = array<i64: 6, 256>}]} {
    %c0 = arith.constant 0 : index
    %c0_0 = arith.constant 0 : index
    %0 = vector.load %arg3[%c0, %c0_0] : memref<6x256xf32, #tpu.memory_space<vmem>>, vector<6x256xf32>
    %c0_1 = arith.constant 0 : index
    %c0_2 = arith.constant 0 : index
    %1 = vector.load %arg1[%c0_1, %c0_2] : memref<6x1xf32, #tpu.memory_space<vmem>>, vector<6x1xf32>
    %2 = vector.broadcast %1 : vector<6x1xf32> to vector<6x256xf32>
    %3 = arith.mulf %0, %2 : vector<6x256xf32>
    %c0_3 = arith.constant 0 : index
    %c0_4 = arith.constant 0 : index
    %4 = vector.load %arg2[%c0_3, %c0_4] : memref<6x1xf32, #tpu.memory_space<vmem>>, vector<6x1xf32>
    %5 = vector.broadcast %4 : vector<6x1xf32> to vector<6x256xf32>
    %6 = arith.addf %3, %5 : vector<6x256xf32>
    %c0_5 = arith.constant 0 : index
    %c0_6 = arith.constant 0 : index
    %7 = vector.load %arg4[%c0_5, %c0_6] : memref<6x256xf32, #tpu.memory_space<vmem>>, vector<6x256xf32>
    tpu.vector_store %arg4[%c0_5, %c0_6], %6 {strides = array<i32>} : memref<6x256xf32, #tpu.memory_space<vmem>>, vector<6x256xf32>,
    return
  }
  func.func @transform_0(%arg0: i32) -> (i32, i32) {
    %c0_i32 = arith.constant 0 : i32
    %c0_i32_0 = arith.constant 0 : i32
    return %arg0, %c0_i32 : i32, i32
  }
  func.func @transform_1(%arg0: i32) -> (i32, i32) {
    %c0_i32 = arith.constant 0 : i32
    %c0_i32_0 = arith.constant 0 : i32
    return %arg0, %c0_i32 : i32, i32
  }
  func.func @transform_2(%arg0: i32) -> (i32, i32) {
    %c0_i32 = arith.constant 0 : i32
    %c0_i32_0 = arith.constant 0 : i32
    return %arg0, %c0_i32 : i32, i32
  }
  func.func @transform_3(%arg0: i32) -> (i32, i32) {
    %c0_i32 = arith.constant 0 : i32
    %c0_i32_0 = arith.constant 0 : i32
    return %arg0, %c0_i32 : i32, i32
  }
}

</mosaic_0001>

<llo_original>
// kernel: tpu_custom_call.1
$region0: #{tpu_custom_call.1}
  #allocation0 [shape = 'u32[]', space=smem, size = 0x4, offset = 0x4, fixed_abs, tag = 'smem constant byte address 0x4 - core index']
  #allocation1 [shape = 'u32[72,128]{1,0:T(1,128)}', space=vmem, size = 0x9000, scoped, tag = 'internal scratch']
  %s0 = inlined_call_operand.vmem [shape: f32[6,1], index: 0, kind: input, shape index: {}]
  %s1 = inlined_call_operand.vmem [shape: f32[6,1], index: 1, kind: input, shape index: {}]
  %s2 = inlined_call_operand.vmem [shape: f32[6,256], index: 2, kind: input, shape index: {}]
  %s3 = inlined_call_operand.hbm [shape: f32[6,256], index: 3, kind: output, shape index: {}]
  %s4 = sld [smem:[#allocation0]]
  $region22: #{tpu_custom_call.1} parent=0
    _
  %s6 = ssub.s32 1, %s4
  %s7 = scalar_select 0, %s6, %s4
  $region1: #{tpu_custom_call.1} parent=0
    #allocation2 [shape = 'u8[8192]{0}', space=vmem, size = 0x2000, scoped, tag = 'output window, operand 0, single buffered']
    #allocation3 [shape = 's32[1]{0}', space=sflag, size = 0x4, scoped, tag = 'scoped memory for tpu_custom_call.1']
    %8 = vsyncpa [#allocation3], 0
    // Predicated region
    $region2: #{tpu_custom_call.1} parent=1 // pred_check
      _
    $region3: #{tpu_custom_call.1} parent=1 // pred_check_branch
      %10 = sbr.rel (0) target = $region5
    $region4: #{tpu_custom_call.1} parent=1 // pred_region
      _
    $region5: #{tpu_custom_call.1} parent=1 // pred_fallthru
      _
    // Predicated region
    $region6: #{tpu_custom_call.1} parent=1 // pred_check
      _
    $region7: #{tpu_custom_call.1} parent=1 // pred_check_branch
      %12 = sbr.rel (0) target = $region9
    $region8: #{tpu_custom_call.1} parent=1 // pred_region
      _
    $region9: #{tpu_custom_call.1} parent=1 // pred_fallthru
      _
    // Predicated region
    $region10: #{tpu_custom_call.1} parent=1 // pred_check
      _
    $region11: #{tpu_custom_call.1} parent=1 // pred_check_branch
      %14 = sbr.rel (0) target = $region13
    $region12: #{tpu_custom_call.1} parent=1 // pred_region
      _
    $region13: #{tpu_custom_call.1} parent=1 // pred_fallthru
      _
    %v15 = vld [vmem:[%s2] sm:$0x3f]
    %v16 = vld [vmem:[%s2 + $0x8] sm:$0x3f]
    %v17 = vld [vmem:[%s0] sm:$0x3f]
    %19 = vset.pattern.permute.xlu0 0
    %20 = vperm.xlu0 %19, %v17
    %v21 = vpop.permute.xlu0 %20
    %v23 = vmul.f32 %v15, %v21
    %v24 = vmul.f32 %v16, %v21
    %v25 = vld [vmem:[%s1] sm:$0x3f]
    %27 = vset.pattern.permute.xlu0 0
    %28 = vperm.xlu0 %27, %v25
    %v29 = vpop.permute.xlu0 %28
    %v31 = vadd.f32 %v23, %v29
    %v32 = vadd.f32 %v24, %v29
    %33 = vst [vmem:[#allocation2] sm:$0x3f] %v31
    %34 = vst [vmem:[#allocation2 + $0x8] sm:$0x3f] %v32
    // Predicated region
    $region14: #{tpu_custom_call.1} parent=1 // pred_check
      _
    $region15: #{tpu_custom_call.1} parent=1 // pred_check_branch
      %36 = sbr.rel (0) target = $region17
    $region16: #{tpu_custom_call.1} parent=1 // pred_region
      %38 = vsyncadd [#allocation3], 0
      %s40 = sshll.u32 [#allocation2], 4
      %s41 = int_to_ptr.vmem [resolvable:$true] %s40
      %s42 = sshll.u32 %s3, 4
      %s43 = int_to_ptr.hbm [resolvable:$true] %s42
      %45 = dma.vmem_to_hbm [thread:$0]  %s41, 256, %s43, [#allocation3]
    $region17: #{tpu_custom_call.1} parent=1 // pred_fallthru
      _
    // Predicated region
    $region18: #{tpu_custom_call.1} parent=1 // pred_check
      _
    $region19: #{tpu_custom_call.1} parent=1 // pred_check_branch
      %47 = sbr.rel (0) target = $region21
    $region20: #{tpu_custom_call.1} parent=1 // pred_region
      %49 = dma.done [#allocation3], 256
    $region21: #{tpu_custom_call.1} parent=1 // pred_fallthru
      _
    %50 = vsyncpa [#allocation3], 1

</llo_original>
